<compile_context>
chip_gen: v5e
topology: v5e:2x2
jax: 0.10.0
libtpu: 0.0.40
codegen_flags: <defaults>
</compile_context>

<pallas_src>
import functools

import jax
import jax.numpy as jnp
from jax.experimental import pallas as pl
from jax.experimental.pallas import tpu as pltpu

LANES = 128
ACC_ROWS = 64   # resident accumulator rows = 8 independent f32 vregs


def _sum_sq_kernel(x_ref, acc_ref, *, total_rows, tile_rows, steps_per_split):
    """Accumulate sum-of-squares of the [M, 128] slab into a (64, 128) block.

    Grid = (splits, steps).  The output block index depends only on the
    leading (parallel) axis, so each split's accumulator stays resident in
    VMEM across its reduction steps and is written back to HBM once.
    """
    c = pl.program_id(0)       # TensorCore split (parallel)
    i = pl.program_id(1)       # reduction step within this split (arbitrary)

    @pl.when(i == 0)
    def _init():
        acc_ref[...] = jnp.zeros_like(acc_ref)

    block_start = (c * steps_per_split + i) * tile_rows
    rows_left = total_rows - block_start

    def _accumulate(xv):
        sq = xv * xv
        # Sublane-group reduction into 8 independent accumulator vregs: pure
        # VPU adds in the hot loop; the single cross-lane reduce happens once,
        # in the wrapper.
        acc_ref[...] += jnp.sum(
            sq.reshape(tile_rows // ACC_ROWS, ACC_ROWS, LANES), axis=0)

    # Hot path: full tile, no masking.
    @pl.when(rows_left >= tile_rows)
    def _full():
        _accumulate(x_ref[...].astype(jnp.float32))

    # Cold path: at most one partial tile per split -- zero the rows that run
    # past the end of the array (their contents are undefined).
    @pl.when(jnp.logical_and(rows_left > 0, rows_left < tile_rows))
    def _partial():
        row_ids = jax.lax.broadcasted_iota(jnp.int32, (tile_rows, LANES), 0)
        xv = jnp.where(row_ids < rows_left, x_ref[...].astype(jnp.float32), 0.0)
        _accumulate(xv)
    # Steps whose block index runs past the array (only possible for the last
    # split when nblocks % n_splits != 0) fall through both `when`s: no-op.


def _round_up(v, m):
    return ((v + m - 1) // m) * m


def sparse_l2_regularization(x, l2_lambda, *, tile_rows=8192):
    """l2_lambda * ||x||_2 over all elements (torch.norm(x, p=2) semantics)."""
    flat = jnp.ravel(x)
    n = flat.shape[0]

    m = n // LANES             # number of full 128-lane rows
    n_main = m * LANES

    tail_ss = jnp.float32(0.0)
    if n_main != n:
        # Lane remainder (< 128 elements) summed in plain JAX.
        # Known cliff: this prefix slice materializes a copy of the main slab
        # in HBM; only hit when numel % 128 != 0, which is rare for this
        # model's parameter/activation shapes.
        tail = flat[n_main:]
        tail_ss = jnp.sum(tail.astype(jnp.float32) ** 2)
        flat = flat[:n_main]

    if m == 0:
        total_ss = tail_ss
    else:
        # Round the tile to a multiple of 64 rows: covers every dtype's
        # sublane packing (8 f32 / 16 bf16 / 32 int8|fp8), so the load stays a
        # clean packed DMA, and keeps tile_rows divisible by ACC_ROWS.
        # Default 8192 rows -> 4 MiB f32 block (8 MiB double-buffered): large
        # enough that per-step overhead is negligible even at v7x's 3.2 TB/s.
        tr = min(_round_up(m, ACC_ROWS), _round_up(tile_rows, ACC_ROWS))
        x2d = flat.reshape(m, LANES)

        nblocks = (m + tr - 1) // tr
        # Shard the reduction over both TensorCores on v7x via a leading
        # "parallel" axis; on single-TC chips (v5e/v6e) it is just a loop.
        n_splits = min(2, nblocks)
        steps_per_split = (nblocks + n_splits - 1) // n_splits

        def in_index_map(c, i):
            b = c * steps_per_split + i
            # Out-of-range trailing steps of the last split clamp onto the
            # last valid block: their accumulate is skipped in the kernel and
            # the repeated block index avoids a fresh DMA.
            return (jnp.minimum(b, nblocks - 1), 0)

        kernel = functools.partial(
            _sum_sq_kernel, total_rows=m, tile_rows=tr,
            steps_per_split=steps_per_split)

        partial_sums = pl.pallas_call(
            kernel,
            out_shape=jax.ShapeDtypeStruct(
                (n_splits, ACC_ROWS, LANES), jnp.float32),
            grid_spec=pltpu.PrefetchScalarGridSpec(
                num_scalar_prefetch=0,
                grid=(n_splits, steps_per_split),
                in_specs=[pl.BlockSpec((tr, LANES), in_index_map)],
                out_specs=pl.BlockSpec((None, ACC_ROWS, LANES),
                                       lambda c, i: (c, 0, 0)),
            ),
            compiler_params=pltpu.CompilerParams(
                dimension_semantics=("parallel", "arbitrary"),
                vmem_limit_bytes=32 * 1024 * 1024,
            ),
            cost_estimate=pl.CostEstimate(
                flops=2 * n_main,
                transcendentals=0,
                bytes_accessed=n_main * x2d.dtype.itemsize
                + n_splits * ACC_ROWS * LANES * 4),
        )(x2d)
        # TODO(synk): if xprof still shows exposed DMA between steps on v7x,
        # add pipeline_mode=pl.Buffered(3) to the input BlockSpec.

        total_ss = jnp.sum(partial_sums) + tail_ss

    # sqrt and lambda applied outside the kernel: a different l2_lambda never
    # triggers a recompile, and the in-kernel finalize path stays trivial.
    return jnp.asarray(l2_lambda, jnp.float32) * jnp.sqrt(total_ss)


if __name__ == "__main__":
    key = jax.random.PRNGKey(0)
    l2_lambda = 0.01

    # Primary check: NCHW input consistent with typical use of this module.
    x = jax.random.normal(key, (2, 4, 16, 16), dtype=jnp.float32)
    result = jax.block_until_ready(sparse_l2_regularization(x, l2_lambda))
    ref = l2_lambda * jnp.sqrt(jnp.sum(x.astype(jnp.float32) ** 2))
    assert jnp.allclose(result, ref, rtol=1e-5, atol=1e-6), (result, ref)

    # Misaligned size: exercises the masked partial block and the <128-lane
    # remainder path.
    y = jax.random.normal(jax.random.PRNGKey(1), (3, 5, 7, 11), dtype=jnp.float32)
    result_y = jax.block_until_ready(sparse_l2_regularization(y, l2_lambda))
    ref_y = l2_lambda * jnp.sqrt(jnp.sum(y.astype(jnp.float32) ** 2))
    assert jnp.allclose(result_y, ref_y, rtol=1e-5, atol=1e-6), (result_y, ref_y)

    # Multi-block check with a small tile override: exercises the two-way
    # core split, the unmasked hot path and the masked last block.
    z = jax.random.normal(jax.random.PRNGKey(2), (2, 100, 128), dtype=jnp.float32)
    result_z = jax.block_until_ready(
        sparse_l2_regularization(z, l2_lambda, tile_rows=64))
    ref_z = l2_lambda * jnp.sqrt(jnp.sum(z.astype(jnp.float32) ** 2))
    assert jnp.allclose(result_z, ref_z, rtol=1e-5, atol=1e-6), (result_z, ref_z)

    print("KERNEL_OK")
</pallas_src>

<mosaic_0001>
module attributes {stable_mosaic.version = 11 : i64} {
  func.func @_sum_sq_kernel(%arg0: i32, %arg1: i32, %arg2: memref<64x128xf32, #tpu.memory_space<vmem>>, %arg3: memref<1x64x128xf32, #tpu.memory_space<vmem>>) attributes {dimension_semantics = [#tpu.dimension_semantics<parallel>, #tpu.dimension_semantics<arbitrary>], iteration_bounds = array<i64: 1, 1>, scalar_prefetch = 0 : i64, scratch_operands = 0 : i64, tpu.core_type = #tpu.core_type<tc>, window_params = [{transform_indices = @transform_0, window_bounds = array<i64: 64, 128>}, {transform_indices = @transform_1, window_bounds = array<i64: 1, 64, 128>}]} {
    %c0_i32 = arith.constant 0 : i32
    %0 = arith.cmpi eq, %arg1, %c0_i32 : i32
    %1 = arith.extui %0 : i1 to i32
    %c0_i32_0 = arith.constant 0 : i32
    %2 = arith.cmpi ne, %1, %c0_i32_0 : i32
    scf.if %2 {
      %cst = arith.constant 0.000000e+00 : f32
      %15 = vector.broadcast %cst : f32 to vector<64x128xf32>
      %c0 = arith.constant 0 : index
      %c0_6 = arith.constant 0 : index
      %c0_7 = arith.constant 0 : index
      %16 = vector.load %arg3[%c0, %c0_6, %c0_7] : memref<1x64x128xf32, #tpu.memory_space<vmem>>, vector<1x64x128xf32>
      %17 = vector.shape_cast %16 : vector<1x64x128xf32> to vector<64x128xf32>
      %18 = vector.shape_cast %15 : vector<64x128xf32> to vector<1x64x128xf32>
      tpu.vector_store %arg3[%c0, %c0_6, %c0_7], %18 {strides = array<i32>} : memref<1x64x128xf32, #tpu.memory_space<vmem>>, vector<1x64x128xf32>,
    } else {
    }
    %c1_i32 = arith.constant 1 : i32
    %3 = arith.muli %arg0, %c1_i32 : i32
    %4 = arith.addi %3, %arg1 : i32
    %c64_i32 = arith.constant 64 : i32
    %5 = arith.muli %4, %c64_i32 : i32
    %c16_i32 = arith.constant 16 : i32
    %6 = arith.subi %c16_i32, %5 : i32
    %c64_i32_1 = arith.constant 64 : i32
    %7 = arith.cmpi sge, %6, %c64_i32_1 : i32
    %8 = arith.extui %7 : i1 to i32
    %c0_i32_2 = arith.constant 0 : i32
    %9 = arith.cmpi ne, %8, %c0_i32_2 : i32
    scf.if %9 {
      %c0 = arith.constant 0 : index
      %c0_6 = arith.constant 0 : index
      %15 = vector.load %arg2[%c0, %c0_6] : memref<64x128xf32, #tpu.memory_space<vmem>>, vector<64x128xf32>
      %16 = arith.mulf %15, %15 : vector<64x128xf32>
      %c0_7 = arith.constant 0 : index
      %c0_8 = arith.constant 0 : index
      %c0_9 = arith.constant 0 : index
      %17 = vector.load %arg3[%c0_7, %c0_8, %c0_9] : memref<1x64x128xf32, #tpu.memory_space<vmem>>, vector<1x64x128xf32>
      %18 = vector.shape_cast %17 : vector<1x64x128xf32> to vector<64x128xf32>
      %19 = vector.shape_cast %16 : vector<64x128xf32> to vector<1x64x128xf32>
      %cst = arith.constant dense<0.000000e+00> : vector<64x128xf32>
      %20 = vector.multi_reduction <add>, %19, %cst [0] : vector<1x64x128xf32> to vector<64x128xf32>
      %21 = arith.addf %18, %20 : vector<64x128xf32>
      %c0_10 = arith.constant 0 : index
      %c0_11 = arith.constant 0 : index
      %c0_12 = arith.constant 0 : index
      %22 = vector.load %arg3[%c0_10, %c0_11, %c0_12] : memref<1x64x128xf32, #tpu.memory_space<vmem>>, vector<1x64x128xf32>
      %23 = vector.shape_cast %22 : vector<1x64x128xf32> to vector<64x128xf32>
      %24 = vector.shape_cast %21 : vector<64x128xf32> to vector<1x64x128xf32>
      tpu.vector_store %arg3[%c0_10, %c0_11, %c0_12], %24 {strides = array<i32>} : memref<1x64x128xf32, #tpu.memory_space<vmem>>, vector<1x64x128xf32>,
    } else {
    }
    %c0_i32_3 = arith.constant 0 : i32
    %10 = arith.cmpi sgt, %6, %c0_i32_3 : i32
    %c64_i32_4 = arith.constant 64 : i32
    %11 = arith.cmpi slt, %6, %c64_i32_4 : i32
    %12 = arith.andi %10, %11 : i1
    %13 = arith.extui %12 : i1 to i32
    %c0_i32_5 = arith.constant 0 : i32
    %14 = arith.cmpi ne, %13, %c0_i32_5 : i32
    scf.if %14 {
      %15 = tpu.iota {dimensions = array<i32: 0>} : vector<64x128xi32>
      %16 = vector.broadcast %6 : i32 to vector<64x128xi32>
      %17 = arith.cmpi slt, %15, %16 : vector<64x128xi32>
      %c0 = arith.constant 0 : index
      %c0_6 = arith.constant 0 : index
      %18 = vector.load %arg2[%c0, %c0_6] : memref<64x128xf32, #tpu.memory_space<vmem>>, vector<64x128xf32>
      %cst = arith.constant 0.000000e+00 : f32
      %19 = vector.broadcast %cst : f32 to vector<64x128xf32>
      %20 = arith.select %17, %18, %19 : vector<64x128xi1>, vector<64x128xf32>
      %21 = arith.mulf %20, %20 : vector<64x128xf32>
      %c0_7 = arith.constant 0 : index
      %c0_8 = arith.constant 0 : index
      %c0_9 = arith.constant 0 : index
      %22 = vector.load %arg3[%c0_7, %c0_8, %c0_9] : memref<1x64x128xf32, #tpu.memory_space<vmem>>, vector<1x64x128xf32>
      %23 = vector.shape_cast %22 : vector<1x64x128xf32> to vector<64x128xf32>
      %24 = vector.shape_cast %21 : vector<64x128xf32> to vector<1x64x128xf32>
      %cst_10 = arith.constant dense<0.000000e+00> : vector<64x128xf32>
      %25 = vector.multi_reduction <add>, %24, %cst_10 [0] : vector<1x64x128xf32> to vector<64x128xf32>
      %26 = arith.addf %23, %25 : vector<64x128xf32>
      %c0_11 = arith.constant 0 : index
      %c0_12 = arith.constant 0 : index
      %c0_13 = arith.constant 0 : index
      %27 = vector.load %arg3[%c0_11, %c0_12, %c0_13] : memref<1x64x128xf32, #tpu.memory_space<vmem>>, vector<1x64x128xf32>
      %28 = vector.shape_cast %27 : vector<1x64x128xf32> to vector<64x128xf32>
      %29 = vector.shape_cast %26 : vector<64x128xf32> to vector<1x64x128xf32>
      tpu.vector_store %arg3[%c0_11, %c0_12, %c0_13], %29 {strides = array<i32>} : memref<1x64x128xf32, #tpu.memory_space<vmem>>, vector<1x64x128xf32>,
    } else {
    }
    return
  }
  func.func @transform_0(%arg0: i32, %arg1: i32) -> (i32, i32) {
    %c1_i32 = arith.constant 1 : i32
    %0 = arith.muli %arg0, %c1_i32 : i32
    %1 = arith.addi %0, %arg1 : i32
    %c0_i32 = arith.constant 0 : i32
    %2 = arith.minsi %1, %c0_i32 : i32
    %c0_i32_0 = arith.constant 0 : i32
    %c0_i32_1 = arith.constant 0 : i32
    return %2, %c0_i32_0 : i32, i32
  }
  func.func @transform_1(%arg0: i32, %arg1: i32) -> (i32, i32, i32) {
    %c0_i32 = arith.constant 0 : i32
    %c0_i32_0 = arith.constant 0 : i32
    %c0_i32_1 = arith.constant 0 : i32
    return %arg0, %c0_i32, %c0_i32_0 : i32, i32, i32
  }
}

</mosaic_0001>

<llo_original>
// kernel: tpu_custom_call.1
$region0: #{tpu_custom_call.1}
  #allocation0 [shape = 'u32[]', space=smem, size = 0x4, offset = 0x4, fixed_abs, tag = 'smem constant byte address 0x4 - core index']
  #allocation1 [shape = 'u32[72,128]{1,0:T(1,128)}', space=vmem, size = 0x9000, scoped, tag = 'internal scratch']
  %s0 = inlined_call_operand.hbm [shape: f32[16,128], index: 0, kind: input, shape index: {}]
  %s1 = inlined_call_operand.hbm [shape: f32[1,64,128], index: 1, kind: output, shape index: {}]
  %s2 = sld [smem:[#allocation0]]
  $region30: #{tpu_custom_call.1} parent=0
    _
  %s4 = ssub.s32 1, %s2
  %s5 = scalar_select 0, %s4, %s2
  $region1: #{tpu_custom_call.1} parent=0
    #allocation2 [shape = 'u8[32768]{0}', space=vmem, size = 0x8000, scoped, tag = 'input window, operand 0, single buffered']
    #allocation3 [shape = 's32[1]{0}', space=sflag, size = 0x4, scoped, tag = 'scoped memory for tpu_custom_call.1']
    #allocation4 [shape = 's32[1]{0}', space=sflag, size = 0x4, scoped, tag = 'scoped memory for tpu_custom_call.1']
    #allocation5 [shape = 'u8[32768]{0}', space=vmem, size = 0x8000, scoped, tag = 'output window, operand 0, single buffered']
    %6 = vsyncpa [#allocation3], 0
    %7 = vsyncpa [#allocation4], 0
    // Predicated region
    $region2: #{tpu_custom_call.1} parent=1 // pred_check
      _
    $region3: #{tpu_custom_call.1} parent=1 // pred_check_branch
      %9 = sbr.rel (0) target = $region5
    $region4: #{tpu_custom_call.1} parent=1 // pred_region
      %s10 = sadd.s32 0, 0
      %p11 = scmp.lt.s32.totalorder %s10, 0
      %s12 = scalar_select %p11, %s10, 0
      %s13 = smul.u32 8, %s12
      %s14 = ssub.s32 2, %s13
      %s15 = smul.u32 8, %s14
      %s16 = ssub.s32 64, %s15
      %s17 = sshll.u32 %s16, 4
      %18 = vsyncadd [#allocation3], %s17
      %p19 = scmp.ne.s32.totalorder 0, %s15
      %s20 = smul.addr %s13, 8
      %s21 = scalar_lea.hbm %s0, %s20
      %s22 = smul.u32 8, %s14
      %s23 = sshll.u32 %s21, 4
      %s24 = int_to_ptr.hbm [resolvable:$true] %s23
      %s25 = sshll.u32 [#allocation2], 4
      %s26 = int_to_ptr.vmem [resolvable:$true] %s25
      %s27 = sshll.u32 %s22, 4
      %31 = dma.hbm_to_vmem [thread:$0]  (%p19), %s24, %s27, %s26, [#allocation3], 128, 128, 8
    $region5: #{tpu_custom_call.1} parent=1 // pred_fallthru
      _
    // Predicated region
    $region6: #{tpu_custom_call.1} parent=1 // pred_check
      _
    $region7: #{tpu_custom_call.1} parent=1 // pred_check_branch
      %33 = sbr.rel (0) target = $region9
    $region8: #{tpu_custom_call.1} parent=1 // pred_region
      %35 = dma.done [#allocation3], 1024
    $region9: #{tpu_custom_call.1} parent=1 // pred_fallthru
      _
    %s36 = sadd.s32 0, 0
    %p37 = scmp.lt.s32.totalorder %s36, 0
    %s38 = scalar_select %p37, %s36, 0
    %s39 = smul.u32 8, %s38
    %s40 = ssub.s32 2, %s39
    %s41 = smul.u32 8, %s40
    %p42 = scmp.eq.s32.totalorder 0, 0
    // Predicated region
    $region10: #{tpu_custom_call.1} parent=1 // pred_check
      %p43 = pneg %p42
    $region11: #{tpu_custom_call.1} parent=1 // pred_check_branch
      %45 = sbr.rel (%p43) target = $region13
    $region12: #{tpu_custom_call.1} parent=1 // pred_region
      %46 = vst [vmem:[#allocation5] sm:$0xff] 0.0
      %47 = vst [vmem:[#allocation5 + $0x8] sm:$0xff] 0.0
      %48 = vst [vmem:[#allocation5 + $0x10] sm:$0xff] 0.0
      %49 = vst [vmem:[#allocation5 + $0x18] sm:$0xff] 0.0
      %50 = vst [vmem:[#allocation5 + $0x20] sm:$0xff] 0.0
      %51 = vst [vmem:[#allocation5 + $0x28] sm:$0xff] 0.0
      %52 = vst [vmem:[#allocation5 + $0x30] sm:$0xff] 0.0
      %53 = vst [vmem:[#allocation5 + $0x38] sm:$0xff] 0.0
    $region13: #{tpu_custom_call.1} parent=1 // pred_fallthru
      _
    %s54 = sadd.s32 0, 0
    %s55 = smul.u32 %s54, 64
    %s56 = ssub.s32 16, %s55
    %p57 = scmp.ge.s32.totalorder %s56, 64
    // Predicated region
    $region14: #{tpu_custom_call.1} parent=1 // pred_check
      %p58 = pneg %p57
    $region15: #{tpu_custom_call.1} parent=1 // pred_check_branch
      %60 = sbr.rel (%p58) target = $region17
    $region16: #{tpu_custom_call.1} parent=1 // pred_region
      %v61 = vld [vmem:[#allocation2] sm:$0xff]
      %v62 = vld [vmem:[#allocation2 + $0x8] sm:$0xff]
      %v63 = vld [vmem:[#allocation2 + $0x10] sm:$0xff]
      %v64 = vld [vmem:[#allocation2 + $0x18] sm:$0xff]
      %v65 = vld [vmem:[#allocation2 + $0x20] sm:$0xff]
      %v66 = vld [vmem:[#allocation2 + $0x28] sm:$0xff]
      %v67 = vld [vmem:[#allocation2 + $0x30] sm:$0xff]
      %v68 = vld [vmem:[#allocation2 + $0x38] sm:$0xff]
      %v69 = vmul.f32 %v61, %v61
      %v70 = vmul.f32 %v62, %v62
      %v71 = vmul.f32 %v63, %v63
      %v72 = vmul.f32 %v64, %v64
      %v73 = vmul.f32 %v65, %v65
      %v74 = vmul.f32 %v66, %v66
      %v75 = vmul.f32 %v67, %v67
      %v76 = vmul.f32 %v68, %v68
      %v77 = vld [vmem:[#allocation5] sm:$0xff]
      %v78 = vld [vmem:[#allocation5 + $0x8] sm:$0xff]
      %v79 = vld [vmem:[#allocation5 + $0x10] sm:$0xff]
      %v80 = vld [vmem:[#allocation5 + $0x18] sm:$0xff]
      %v81 = vld [vmem:[#allocation5 + $0x20] sm:$0xff]
      %v82 = vld [vmem:[#allocation5 + $0x28] sm:$0xff]
      %v83 = vld [vmem:[#allocation5 + $0x30] sm:$0xff]
      %v84 = vld [vmem:[#allocation5 + $0x38] sm:$0xff]
      %v85 = vadd.f32 %v69, 0.0
      %v86 = vadd.f32 %v70, 0.0
      %v87 = vadd.f32 %v71, 0.0
      %v88 = vadd.f32 %v72, 0.0
      %v89 = vadd.f32 %v73, 0.0
      %v90 = vadd.f32 %v74, 0.0
      %v91 = vadd.f32 %v75, 0.0
      %v92 = vadd.f32 %v76, 0.0
      %v93 = vadd.f32 %v77, %v85
      %v94 = vadd.f32 %v78, %v86
      %v95 = vadd.f32 %v79, %v87
      %v96 = vadd.f32 %v80, %v88
      %v97 = vadd.f32 %v81, %v89
      %v98 = vadd.f32 %v82, %v90
      %v99 = vadd.f32 %v83, %v91
      %v100 = vadd.f32 %v84, %v92
      %101 = vst [vmem:[#allocation5] sm:$0xff] %v93
      %102 = vst [vmem:[#allocation5 + $0x8] sm:$0xff] %v94
      %103 = vst [vmem:[#allocation5 + $0x10] sm:$0xff] %v95
      %104 = vst [vmem:[#allocation5 + $0x18] sm:$0xff] %v96
      %105 = vst [vmem:[#allocation5 + $0x20] sm:$0xff] %v97
      %106 = vst [vmem:[#allocation5 + $0x28] sm:$0xff] %v98
      %107 = vst [vmem:[#allocation5 + $0x30] sm:$0xff] %v99
      %108 = vst [vmem:[#allocation5 + $0x38] sm:$0xff] %v100
    $region17: #{tpu_custom_call.1} parent=1 // pred_fallthru
      _
    %p109 = scmp.gt.s32.totalorder %s56, 0
    %p110 = scmp.lt.s32.totalorder %s56, 64
    %p111 = pnand %p109, %p110
    %p112 = pneg %p111
    // Predicated region
    $region18: #{tpu_custom_call.1} parent=1 // pred_check
      _
    $region19: #{tpu_custom_call.1} parent=1 // pred_check_branch
      %114 = sbr.rel (%p111) target = $region21
    $region20: #{tpu_custom_call.1} parent=1 // pred_region
      %v115 = vlaneseq
      %v116 = vshrl.u32 %v115, 7
      %v117 = vadd.s32 %v116, 8
      %v118 = vadd.s32 %v116, 16
      %v119 = vadd.s32 %v116, 24
      %v120 = vadd.s32 %v116, 32
      %v121 = vadd.s32 %v116, 40
      %v122 = vadd.s32 %v116, 48
      %v123 = vadd.s32 %v116, 56
      %v124 = vstv %s56
      %vm125 = vcmp.lt.s32.totalorder %v116, %v124
      %vm126 = vcmp.lt.s32.totalorder %v117, %v124
      %vm127 = vcmp.lt.s32.totalorder %v118, %v124
      %vm128 = vcmp.lt.s32.totalorder %v119, %v124
      %vm129 = vcmp.lt.s32.totalorder %v120, %v124
      %vm130 = vcmp.lt.s32.totalorder %v121, %v124
      %vm131 = vcmp.lt.s32.totalorder %v122, %v124
      %vm132 = vcmp.lt.s32.totalorder %v123, %v124
      %v133 = vld [vmem:[#allocation2] sm:$0xff]
      %v134 = vld [vmem:[#allocation2 + $0x8] sm:$0xff]
      %v135 = vld [vmem:[#allocation2 + $0x10] sm:$0xff]
      %v136 = vld [vmem:[#allocation2 + $0x18] sm:$0xff]
      %v137 = vld [vmem:[#allocation2 + $0x20] sm:$0xff]
      %v138 = vld [vmem:[#allocation2 + $0x28] sm:$0xff]
      %v139 = vld [vmem:[#allocation2 + $0x30] sm:$0xff]
      %v140 = vld [vmem:[#allocation2 + $0x38] sm:$0xff]
      %v141 = vsel %vm125, %v133, 0.0
      %v142 = vsel %vm126, %v134, 0.0
      %v143 = vsel %vm127, %v135, 0.0
      %v144 = vsel %vm128, %v136, 0.0
      %v145 = vsel %vm129, %v137, 0.0
      %v146 = vsel %vm130, %v138, 0.0
      %v147 = vsel %vm131, %v139, 0.0
      %v148 = vsel %vm132, %v140, 0.0
      %v149 = vmul.f32 %v141, %v141
      %v150 = vmul.f32 %v142, %v142
      %v151 = vmul.f32 %v143, %v143
      %v152 = vmul.f32 %v144, %v144
      %v153 = vmul.f32 %v145, %v145
      %v154 = vmul.f32 %v146, %v146
      %v155 = vmul.f32 %v147, %v147
      %v156 = vmul.f32 %v148, %v148
      %v157 = vld [vmem:[#allocation5] sm:$0xff]
      %v158 = vld [vmem:[#allocation5 + $0x8] sm:$0xff]
      %v159 = vld [vmem:[#allocation5 + $0x10] sm:$0xff]
      %v160 = vld [vmem:[#allocation5 + $0x18] sm:$0xff]
      %v161 = vld [vmem:[#allocation5 + $0x20] sm:$0xff]
      %v162 = vld [vmem:[#allocation5 + $0x28] sm:$0xff]
      %v163 = vld [vmem:[#allocation5 + $0x30] sm:$0xff]
      %v164 = vld [vmem:[#allocation5 + $0x38] sm:$0xff]
      %v165 = vadd.f32 %v149, 0.0
      %v166 = vadd.f32 %v150, 0.0
      %v167 = vadd.f32 %v151, 0.0
      %v168 = vadd.f32 %v152, 0.0
      %v169 = vadd.f32 %v153, 0.0
      %v170 = vadd.f32 %v154, 0.0
      %v171 = vadd.f32 %v155, 0.0
      %v172 = vadd.f32 %v156, 0.0
      %v173 = vadd.f32 %v157, %v165
      %v174 = vadd.f32 %v158, %v166
      %v175 = vadd.f32 %v159, %v167
      %v176 = vadd.f32 %v160, %v168
      %v177 = vadd.f32 %v161, %v169
      %v178 = vadd.f32 %v162, %v170
      %v179 = vadd.f32 %v163, %v171
      %v180 = vadd.f32 %v164, %v172
      %181 = vst [vmem:[#allocation5] sm:$0xff] %v173
      %182 = vst [vmem:[#allocation5 + $0x8] sm:$0xff] %v174
      %183 = vst [vmem:[#allocation5 + $0x10] sm:$0xff] %v175
      %184 = vst [vmem:[#allocation5 + $0x18] sm:$0xff] %v176
      %185 = vst [vmem:[#allocation5 + $0x20] sm:$0xff] %v177
      %186 = vst [vmem:[#allocation5 + $0x28] sm:$0xff] %v178
      %187 = vst [vmem:[#allocation5 + $0x30] sm:$0xff] %v179
      %188 = vst [vmem:[#allocation5 + $0x38] sm:$0xff] %v180
    $region21: #{tpu_custom_call.1} parent=1 // pred_fallthru
      _
    // Predicated region
    $region22: #{tpu_custom_call.1} parent=1 // pred_check
      _
    $region23: #{tpu_custom_call.1} parent=1 // pred_check_branch
      %190 = sbr.rel (0) target = $region25
    $region24: #{tpu_custom_call.1} parent=1 // pred_region
      %192 = vsyncadd [#allocation4], 0
      %s193 = sshll.u32 [#allocation5], 4
      %s194 = int_to_ptr.vmem [resolvable:$true] %s193
      %s195 = sshll.u32 %s1, 4
      %s196 = int_to_ptr.hbm [resolvable:$true] %s195
      %201 = dma.vmem_to_hbm [thread:$0]  %s194, 1024, %s196, [#allocation4], 128, 128, 8
    $region25: #{tpu_custom_call.1} parent=1 // pred_fallthru
      _
    // Predicated region
    $region26: #{tpu_custom_call.1} parent=1 // pred_check
      _
    $region27: #{tpu_custom_call.1} parent=1 // pred_check_branch
      %203 = sbr.rel (0) target = $region29
    $region28: #{tpu_custom_call.1} parent=1 // pred_region
      %205 = dma.done [#allocation4], 1024
    $region29: #{tpu_custom_call.1} parent=1 // pred_fallthru
      _
    %206 = vsyncpa [#allocation3], 1
    %207 = vsyncpa [#allocation4], 1

</llo_original>
